<compile_context>
chip_gen: v5e
topology: v5e:2x2
jax: 0.10.0
libtpu: 0.0.40
codegen_flags: <defaults>
</compile_context>

<pallas_src>
import functools
import math

import numpy as np
import jax
import jax.numpy as jnp
from jax.experimental import pallas as pl
from jax.experimental.pallas import tpu as pltpu

E_LAMBDA = 1e-4
BN_EPS = 1e-5
APPROX_RECIP = False   # exact reciprocal: denominator is only (R, 1), cost is negligible


# ---------------------------------------------------------------------------
# In-kernel helpers (operate on (R, N) f32 blocks, rows = packed (batch, channel))
# ---------------------------------------------------------------------------
def _sigmoid(x):
    # One EUP push (tanh) instead of exp + divide.
    return 0.5 * jnp.tanh(0.5 * x) + 0.5


def _simam(x):
    """SimAM over the flattened spatial axis. x: (R, N) f32, one (b, c) per row."""
    n_spatial = x.shape[1]
    mu = jnp.sum(x, axis=1, keepdims=True) * (1.0 / n_spatial)
    xms = (x - mu) ** 2
    denom = 4.0 * (jnp.sum(xms, axis=1, keepdims=True) * (1.0 / (n_spatial - 1))
                   + E_LAMBDA)
    inv = pl.reciprocal(denom, approx=APPROX_RECIP)     # (R, 1): tiny
    y = xms * inv + 0.5
    return x * _sigmoid(y)


def _box3_flat(x, stride, m_far, m_near):
    """3-tap zero-padded box sum along one structured axis of the flat volume.

    Uses cyclic lane rotations (pltpu.roll, XLU slot) plus precomputed boundary
    masks (1 vmul each) instead of iota/cmp/select.
    """
    n = x.shape[1]
    fwd = pltpu.roll(x, n - stride, axis=1)   # element i <- x[i + stride]
    bwd = pltpu.roll(x, stride, axis=1)       # element i <- x[i - stride]
    return x + fwd * m_far + bwd * m_near


def _diff_core(x, wblk, bias, masks, *, H, W):
    """diff_module_3d body: simam -> edge -> gate -> simam.  x: (R, N) f32."""
    xs = _simam(x)
    mwf, mwn, mhf, mhn, mdf, mdn = masks

    # AvgPool3d(3, stride=1, pad=1, count_include_pad=True) as separable box sums.
    s = _box3_flat(xs, 1, mwf, mwn)
    s = _box3_flat(s, W, mhf, mhn)
    s = _box3_flat(s, W * H, mdf, mdn)
    edge = xs - s * (1.0 / 27.0)

    # Channel mix: conv1x1x1 + BN folded into block-diagonal (R, R) weight -> MXU
    # (MXU has full slack; keeps the C^2 FMAs off the binding VALU slot).
    conv = jnp.dot(wblk, edge, preferred_element_type=jnp.float32,
                   precision=jax.lax.Precision.HIGHEST) + bias

    out = xs * (1.5 + 0.5 * jnp.tanh(0.5 * conv))   # xs * (1 + sigmoid(conv))
    return _simam(out)


# ---------------------------------------------------------------------------
# Fused kernel: diff(x1), diff(x2), simam(|d1 - d2|)
# ---------------------------------------------------------------------------
def cbm_kernel(x1_ref, x2_ref, m_ref, w1_ref, b1_ref, w2_ref, b2_ref, o_ref, *, H, W):
    R, N = x1_ref.shape
    x1 = x1_ref[...].astype(jnp.float32)
    x2 = x2_ref[...].astype(jnp.float32)

    # Hoist the sublane-broadcast of the (1, N) boundary masks (each reused by both
    # diff cores); JAX does not CSE broadcast_in_dim.
    masks = tuple(jnp.broadcast_to(m_ref[i:i + 1, :], (R, N)) for i in range(6))

    w1 = w1_ref[...].astype(jnp.float32)
    b1 = b1_ref[...].astype(jnp.float32)
    w2 = w2_ref[...].astype(jnp.float32)
    b2 = b2_ref[...].astype(jnp.float32)

    d1 = _diff_core(x1, w1, b1, masks, H=H, W=W)
    d2 = _diff_core(x2, w2, b2, masks, H=H, W=W)
    o_ref[...] = _simam(jnp.abs(d1 - d2)).astype(o_ref.dtype)


# ---------------------------------------------------------------------------
# Wrapper
# ---------------------------------------------------------------------------
@jax.jit
def cbm3d_forward(x1, x2, w1, b1, w2, b2):
    """CBM_3d forward. x1, x2: (B, C, D, H, W) float32 (NCDHW). w: (C, C), b: (C, 1)."""
    B, C, D, H, W = x1.shape
    N = D * H * W
    assert N > 1, "SimAM divides by D*H*W - 1; spatial volume must be > 1."

    R = math.lcm(C, 8)              # rows per grid step: sublane-full (multiple of 8)
    G = R // C                      # batches packed per grid step
    B_pad = ((B + G - 1) // G) * G  # zero-pad batches so each tile holds whole batches
    n_tiles = B_pad // G

    def prep(x):
        xf = x.reshape(B, C, N)
        if B_pad != B:
            xf = jnp.pad(xf, ((0, B_pad - B), (0, 0), (0, 0)))
        return xf.reshape(B_pad * C, N)

    x1f = prep(x1)
    x2f = prep(x2)

    # Block-diagonal folded conv+BN weight across the G packed batches.
    eye = jnp.eye(G, dtype=jnp.float32)
    w1blk = jnp.kron(eye, w1)
    w2blk = jnp.kron(eye, w2)
    b1blk = jnp.tile(b1, (G, 1))
    b2blk = jnp.tile(b2, (G, 1))

    # Zero-pad boundary masks of the flat D*H*W layout (trace-time constants).
    idx = np.arange(N)
    w_idx = idx % W
    h_idx = (idx // W) % H
    d_idx = idx // (W * H)
    masks = jnp.asarray(np.stack([w_idx != W - 1, w_idx != 0,
                                  h_idx != H - 1, h_idx != 0,
                                  d_idx != D - 1, d_idx != 0]).astype(np.float32))

    spec_x = pl.BlockSpec((R, N), lambda i: (i, 0))
    spec_m = pl.BlockSpec((6, N), lambda i: (0, 0))
    spec_w = pl.BlockSpec((R, R), lambda i: (0, 0))
    spec_b = pl.BlockSpec((R, 1), lambda i: (0, 0))

    out = pl.pallas_call(
        functools.partial(cbm_kernel, H=H, W=W),
        out_shape=jax.ShapeDtypeStruct((B_pad * C, N), x1.dtype),
        grid=(n_tiles,),
        in_specs=[spec_x, spec_x, spec_m, spec_w, spec_b, spec_w, spec_b],
        out_specs=spec_x,
        compiler_params=pltpu.CompilerParams(
            dimension_semantics=("parallel",),
            vmem_limit_bytes=48 * 1024 * 1024),
    )(x1f, x2f, masks, w1blk, b1blk, w2blk, b2blk)

    return out[:B * C].reshape(B, C, D, H, W)


# ---------------------------------------------------------------------------
# Parameter construction (deterministic, PyTorch-default-style init, BN folded)
# ---------------------------------------------------------------------------
def make_diff_params(key, C):
    kw, kb = jax.random.split(key)
    bound = 1.0 / jnp.sqrt(jnp.float32(C))          # fan_in = C*1*1*1
    w_conv = jax.random.uniform(kw, (C, C), jnp.float32, -bound, bound)
    b_conv = jax.random.uniform(kb, (C,), jnp.float32, -bound, bound)
    # BatchNorm3d eval-mode defaults: gamma=1, beta=0, running_mean=0, running_var=1
    gamma = jnp.ones((C,), jnp.float32)
    beta = jnp.zeros((C,), jnp.float32)
    r_mean = jnp.zeros((C,), jnp.float32)
    r_var = jnp.ones((C,), jnp.float32)
    scale = gamma / jnp.sqrt(r_var + BN_EPS)
    w_fold = scale[:, None] * w_conv
    b_fold = (scale * (b_conv - r_mean) + beta).reshape(C, 1)
    return w_fold, b_fold


# ---------------------------------------------------------------------------
# Pure-JAX reference (mirrors the PyTorch forward)
# ---------------------------------------------------------------------------
def _ref_simam(x):
    B, C, D, H, W = x.shape
    n = D * H * W - 1
    mu = x.mean(axis=(2, 3, 4), keepdims=True)
    xms = (x - mu) ** 2
    y = xms / (4.0 * (xms.sum(axis=(2, 3, 4), keepdims=True) / n + E_LAMBDA)) + 0.5
    return x * jax.nn.sigmoid(y)


def _ref_avgpool3(x):
    B, C, D, H, W = x.shape
    xp = jnp.pad(x, ((0, 0), (0, 0), (1, 1), (1, 1), (1, 1)))
    s = jnp.zeros_like(x)
    for i in range(3):
        for j in range(3):
            for k in range(3):
                s = s + xp[:, :, i:i + D, j:j + H, k:k + W]
    return s / 27.0


def _ref_diff(x, w_fold, b_fold):
    xs = _ref_simam(x)
    edge = xs - _ref_avgpool3(xs)
    conv = (jnp.einsum('oc,bcdhw->bodhw', w_fold, edge, precision='highest')
            + b_fold[:, 0][None, :, None, None, None])
    gate = jax.nn.sigmoid(conv)
    out = gate * xs + xs
    return _ref_simam(out)


def _ref_cbm(x1, x2, w1, b1, w2, b2):
    d = jnp.abs(_ref_diff(x1, w1, b1) - _ref_diff(x2, w2, b2))
    return _ref_simam(d)


# ---------------------------------------------------------------------------
if __name__ == "__main__":
    key = jax.random.PRNGKey(0)
    k1, k2, kp1, kp2 = jax.random.split(key, 4)

    B, C, D, H, W = 2, 4, 4, 8, 8      # N = D*H*W = 256 -> lane-dense last dim
    x1 = jax.random.normal(k1, (B, C, D, H, W), jnp.float32)
    x2 = jax.random.normal(k2, (B, C, D, H, W), jnp.float32)

    w1, b1 = make_diff_params(kp1, C)
    w2, b2 = make_diff_params(kp2, C)

    out = jax.block_until_ready(cbm3d_forward(x1, x2, w1, b1, w2, b2))

    ref = _ref_cbm(x1, x2, w1, b1, w2, b2)
    assert out.shape == ref.shape
    err = float(jnp.max(jnp.abs(out - ref)))
    assert err < 2e-4, err

    print("KERNEL_OK")
</pallas_src>

<mosaic_0001>
module attributes {stable_mosaic.version = 11 : i64} {
  func.func @cbm_kernel(%arg0: i32, %arg1: memref<8x256xf32, #tpu.memory_space<vmem>>, %arg2: memref<8x256xf32, #tpu.memory_space<vmem>>, %arg3: memref<6x256xf32, #tpu.memory_space<vmem>>, %arg4: memref<8x8xf32, #tpu.memory_space<vmem>>, %arg5: memref<8x1xf32, #tpu.memory_space<vmem>>, %arg6: memref<8x8xf32, #tpu.memory_space<vmem>>, %arg7: memref<8x1xf32, #tpu.memory_space<vmem>>, %arg8: memref<8x256xf32, #tpu.memory_space<vmem>>) attributes {dimension_semantics = [#tpu.dimension_semantics<parallel>], iteration_bounds = array<i64: 1>, scalar_prefetch = 0 : i64, scratch_operands = 0 : i64, tpu.core_type = #tpu.core_type<tc>, window_params = [{transform_indices = @transform_0, window_bounds = array<i64: 8, 256>}, {transform_indices = @transform_1, window_bounds = array<i64: 8, 256>}, {pipeline_mode = #tpu.pipeline_mode<synchronous>, transform_indices = @transform_2, window_bounds = array<i64: 6, 256>}, {pipeline_mode = #tpu.pipeline_mode<synchronous>, transform_indices = @transform_3, window_bounds = array<i64: 8, 8>}, {pipeline_mode = #tpu.pipeline_mode<synchronous>, transform_indices = @transform_4, window_bounds = array<i64: 8, 1>}, {pipeline_mode = #tpu.pipeline_mode<synchronous>, transform_indices = @transform_5, window_bounds = array<i64: 8, 8>}, {pipeline_mode = #tpu.pipeline_mode<synchronous>, transform_indices = @transform_6, window_bounds = array<i64: 8, 1>}, {transform_indices = @transform_7, window_bounds = array<i64: 8, 256>}]} {
    %c0 = arith.constant 0 : index
    %c0_0 = arith.constant 0 : index
    %0 = vector.load %arg1[%c0, %c0_0] : memref<8x256xf32, #tpu.memory_space<vmem>>, vector<8x256xf32>
    %c0_1 = arith.constant 0 : index
    %c0_2 = arith.constant 0 : index
    %1 = vector.load %arg2[%c0_1, %c0_2] : memref<8x256xf32, #tpu.memory_space<vmem>>, vector<8x256xf32>
    %c0_3 = arith.constant 0 : index
    %c0_4 = arith.constant 0 : index
    %2 = vector.load %arg3[%c0_3, %c0_4] : memref<6x256xf32, #tpu.memory_space<vmem>>, vector<1x256xf32>
    %3 = vector.shape_cast %2 : vector<1x256xf32> to vector<1x256xf32>
    %4 = vector.broadcast %3 : vector<1x256xf32> to vector<8x256xf32>
    %c1 = arith.constant 1 : index
    %c0_5 = arith.constant 0 : index
    %5 = vector.load %arg3[%c1, %c0_5] : memref<6x256xf32, #tpu.memory_space<vmem>>, vector<1x256xf32>
    %6 = vector.shape_cast %5 : vector<1x256xf32> to vector<1x256xf32>
    %7 = vector.broadcast %6 : vector<1x256xf32> to vector<8x256xf32>
    %c2 = arith.constant 2 : index
    %c0_6 = arith.constant 0 : index
    %8 = vector.load %arg3[%c2, %c0_6] : memref<6x256xf32, #tpu.memory_space<vmem>>, vector<1x256xf32>
    %9 = vector.shape_cast %8 : vector<1x256xf32> to vector<1x256xf32>
    %10 = vector.broadcast %9 : vector<1x256xf32> to vector<8x256xf32>
    %c3 = arith.constant 3 : index
    %c0_7 = arith.constant 0 : index
    %11 = vector.load %arg3[%c3, %c0_7] : memref<6x256xf32, #tpu.memory_space<vmem>>, vector<1x256xf32>
    %12 = vector.shape_cast %11 : vector<1x256xf32> to vector<1x256xf32>
    %13 = vector.broadcast %12 : vector<1x256xf32> to vector<8x256xf32>
    %c4 = arith.constant 4 : index
    %c0_8 = arith.constant 0 : index
    %14 = vector.load %arg3[%c4, %c0_8] : memref<6x256xf32, #tpu.memory_space<vmem>>, vector<1x256xf32>
    %15 = vector.shape_cast %14 : vector<1x256xf32> to vector<1x256xf32>
    %16 = vector.broadcast %15 : vector<1x256xf32> to vector<8x256xf32>
    %c5 = arith.constant 5 : index
    %c0_9 = arith.constant 0 : index
    %17 = vector.load %arg3[%c5, %c0_9] : memref<6x256xf32, #tpu.memory_space<vmem>>, vector<1x256xf32>
    %18 = vector.shape_cast %17 : vector<1x256xf32> to vector<1x256xf32>
    %19 = vector.broadcast %18 : vector<1x256xf32> to vector<8x256xf32>
    %c0_10 = arith.constant 0 : index
    %c0_11 = arith.constant 0 : index
    %20 = vector.load %arg4[%c0_10, %c0_11] : memref<8x8xf32, #tpu.memory_space<vmem>>, vector<8x8xf32>
    %c0_12 = arith.constant 0 : index
    %c0_13 = arith.constant 0 : index
    %21 = vector.load %arg5[%c0_12, %c0_13] : memref<8x1xf32, #tpu.memory_space<vmem>>, vector<8x1xf32>
    %c0_14 = arith.constant 0 : index
    %c0_15 = arith.constant 0 : index
    %22 = vector.load %arg6[%c0_14, %c0_15] : memref<8x8xf32, #tpu.memory_space<vmem>>, vector<8x8xf32>
    %c0_16 = arith.constant 0 : index
    %c0_17 = arith.constant 0 : index
    %23 = vector.load %arg7[%c0_16, %c0_17] : memref<8x1xf32, #tpu.memory_space<vmem>>, vector<8x1xf32>
    %cst = arith.constant dense<0.000000e+00> : vector<8xf32>
    %24 = vector.multi_reduction <add>, %0, %cst [1] : vector<8x256xf32> to vector<8xf32>
    %25 = vector.shape_cast %24 : vector<8xf32> to vector<8x1xf32>
    %cst_18 = arith.constant 3.906250e-03 : f32
    %26 = vector.broadcast %cst_18 : f32 to vector<8x1xf32>
    %27 = arith.mulf %25, %26 : vector<8x1xf32>
    %28 = vector.broadcast %27 : vector<8x1xf32> to vector<8x256xf32>
    %29 = arith.subf %0, %28 : vector<8x256xf32>
    %30 = arith.mulf %29, %29 : vector<8x256xf32>
    %cst_19 = arith.constant dense<0.000000e+00> : vector<8xf32>
    %31 = vector.multi_reduction <add>, %30, %cst_19 [1] : vector<8x256xf32> to vector<8xf32>
    %32 = vector.shape_cast %31 : vector<8xf32> to vector<8x1xf32>
    %cst_20 = arith.constant 0.00392156886 : f32
    %33 = vector.broadcast %cst_20 : f32 to vector<8x1xf32>
    %34 = arith.mulf %32, %33 : vector<8x1xf32>
    %cst_21 = arith.constant 9.99999974E-5 : f32
    %35 = vector.broadcast %cst_21 : f32 to vector<8x1xf32>
    %36 = arith.addf %34, %35 : vector<8x1xf32>
    %cst_22 = arith.constant 4.000000e+00 : f32
    %37 = vector.broadcast %cst_22 : f32 to vector<8x1xf32>
    %38 = arith.mulf %37, %36 : vector<8x1xf32>
    %39 = tpu.reciprocal %38 : vector<8x1xf32> -> vector<8x1xf32>
    %40 = vector.broadcast %39 : vector<8x1xf32> to vector<8x256xf32>
    %41 = arith.mulf %30, %40 : vector<8x256xf32>
    %cst_23 = arith.constant 5.000000e-01 : f32
    %42 = vector.broadcast %cst_23 : f32 to vector<8x256xf32>
    %43 = arith.addf %41, %42 : vector<8x256xf32>
    %cst_24 = arith.constant 5.000000e-01 : f32
    %44 = vector.broadcast %cst_24 : f32 to vector<8x256xf32>
    %45 = arith.mulf %44, %43 : vector<8x256xf32>
    %46 = math.tanh %45 : vector<8x256xf32>
    %cst_25 = arith.constant 5.000000e-01 : f32
    %47 = vector.broadcast %cst_25 : f32 to vector<8x256xf32>
    %48 = arith.mulf %47, %46 : vector<8x256xf32>
    %cst_26 = arith.constant 5.000000e-01 : f32
    %49 = vector.broadcast %cst_26 : f32 to vector<8x256xf32>
    %50 = arith.addf %48, %49 : vector<8x256xf32>
    %51 = arith.mulf %0, %50 : vector<8x256xf32>
    %c255_i32 = arith.constant 255 : i32
    %52 = tpu.dynamic_rotate %51 by %c255_i32 dim 1 : vector<8x256xf32>, i32 -> vector<8x256xf32>
    %c1_i32 = arith.constant 1 : i32
    %53 = tpu.dynamic_rotate %51 by %c1_i32 dim 1 : vector<8x256xf32>, i32 -> vector<8x256xf32>
    %54 = arith.mulf %52, %4 : vector<8x256xf32>
    %55 = arith.addf %51, %54 : vector<8x256xf32>
    %56 = arith.mulf %53, %7 : vector<8x256xf32>
    %57 = arith.addf %55, %56 : vector<8x256xf32>
    %c248_i32 = arith.constant 248 : i32
    %58 = tpu.dynamic_rotate %57 by %c248_i32 dim 1 : vector<8x256xf32>, i32 -> vector<8x256xf32>
    %c8_i32 = arith.constant 8 : i32
    %59 = tpu.dynamic_rotate %57 by %c8_i32 dim 1 : vector<8x256xf32>, i32 -> vector<8x256xf32>
    %60 = arith.mulf %58, %10 : vector<8x256xf32>
    %61 = arith.addf %57, %60 : vector<8x256xf32>
    %62 = arith.mulf %59, %13 : vector<8x256xf32>
    %63 = arith.addf %61, %62 : vector<8x256xf32>
    %c192_i32 = arith.constant 192 : i32
    %64 = tpu.dynamic_rotate %63 by %c192_i32 dim 1 : vector<8x256xf32>, i32 -> vector<8x256xf32>
    %c64_i32 = arith.constant 64 : i32
    %65 = tpu.dynamic_rotate %63 by %c64_i32 dim 1 : vector<8x256xf32>, i32 -> vector<8x256xf32>
    %66 = arith.mulf %64, %16 : vector<8x256xf32>
    %67 = arith.addf %63, %66 : vector<8x256xf32>
    %68 = arith.mulf %65, %19 : vector<8x256xf32>
    %69 = arith.addf %67, %68 : vector<8x256xf32>
    %cst_27 = arith.constant 0.0370370373 : f32
    %70 = vector.broadcast %cst_27 : f32 to vector<8x256xf32>
    %71 = arith.mulf %69, %70 : vector<8x256xf32>
    %72 = arith.subf %51, %71 : vector<8x256xf32>
    %cst_28 = arith.constant dense<0.000000e+00> : vector<8x256xf32>
    %73 = tpu.matmul %20, %72, %cst_28 {dimension_numbers = #tpu.dot_dimension_numbers<[1], [0], [0], [1], [0, 0, 1, 1], [], []>, precision = #tpu.contract_precision<fp32>} : vector<8x8xf32>, vector<8x256xf32>, vector<8x256xf32> -> vector<8x256xf32>
    %74 = vector.broadcast %21 : vector<8x1xf32> to vector<8x256xf32>
    %75 = arith.addf %73, %74 : vector<8x256xf32>
    %cst_29 = arith.constant 5.000000e-01 : f32
    %76 = vector.broadcast %cst_29 : f32 to vector<8x256xf32>
    %77 = arith.mulf %76, %75 : vector<8x256xf32>
    %78 = math.tanh %77 : vector<8x256xf32>
    %cst_30 = arith.constant 5.000000e-01 : f32
    %79 = vector.broadcast %cst_30 : f32 to vector<8x256xf32>
    %80 = arith.mulf %79, %78 : vector<8x256xf32>
    %cst_31 = arith.constant 1.500000e+00 : f32
    %81 = vector.broadcast %cst_31 : f32 to vector<8x256xf32>
    %82 = arith.addf %81, %80 : vector<8x256xf32>
    %83 = arith.mulf %51, %82 : vector<8x256xf32>
    %cst_32 = arith.constant dense<0.000000e+00> : vector<8xf32>
    %84 = vector.multi_reduction <add>, %83, %cst_32 [1] : vector<8x256xf32> to vector<8xf32>
    %85 = vector.shape_cast %84 : vector<8xf32> to vector<8x1xf32>
    %cst_33 = arith.constant 3.906250e-03 : f32
    %86 = vector.broadcast %cst_33 : f32 to vector<8x1xf32>
    %87 = arith.mulf %85, %86 : vector<8x1xf32>
    %88 = vector.broadcast %87 : vector<8x1xf32> to vector<8x256xf32>
    %89 = arith.subf %83, %88 : vector<8x256xf32>
    %90 = arith.mulf %89, %89 : vector<8x256xf32>
    %cst_34 = arith.constant dense<0.000000e+00> : vector<8xf32>
    %91 = vector.multi_reduction <add>, %90, %cst_34 [1] : vector<8x256xf32> to vector<8xf32>
    %92 = vector.shape_cast %91 : vector<8xf32> to vector<8x1xf32>
    %cst_35 = arith.constant 0.00392156886 : f32
    %93 = vector.broadcast %cst_35 : f32 to vector<8x1xf32>
    %94 = arith.mulf %92, %93 : vector<8x1xf32>
    %cst_36 = arith.constant 9.99999974E-5 : f32
    %95 = vector.broadcast %cst_36 : f32 to vector<8x1xf32>
    %96 = arith.addf %94, %95 : vector<8x1xf32>
    %cst_37 = arith.constant 4.000000e+00 : f32
    %97 = vector.broadcast %cst_37 : f32 to vector<8x1xf32>
    %98 = arith.mulf %97, %96 : vector<8x1xf32>
    %99 = tpu.reciprocal %98 : vector<8x1xf32> -> vector<8x1xf32>
    %100 = vector.broadcast %99 : vector<8x1xf32> to vector<8x256xf32>
    %101 = arith.mulf %90, %100 : vector<8x256xf32>
    %cst_38 = arith.constant 5.000000e-01 : f32
    %102 = vector.broadcast %cst_38 : f32 to vector<8x256xf32>
    %103 = arith.addf %101, %102 : vector<8x256xf32>
    %cst_39 = arith.constant 5.000000e-01 : f32
    %104 = vector.broadcast %cst_39 : f32 to vector<8x256xf32>
    %105 = arith.mulf %104, %103 : vector<8x256xf32>
    %106 = math.tanh %105 : vector<8x256xf32>
    %cst_40 = arith.constant 5.000000e-01 : f32
    %107 = vector.broadcast %cst_40 : f32 to vector<8x256xf32>
    %108 = arith.mulf %107, %106 : vector<8x256xf32>
    %cst_41 = arith.constant 5.000000e-01 : f32
    %109 = vector.broadcast %cst_41 : f32 to vector<8x256xf32>
    %110 = arith.addf %108, %109 : vector<8x256xf32>
    %111 = arith.mulf %83, %110 : vector<8x256xf32>
    %cst_42 = arith.constant dense<0.000000e+00> : vector<8xf32>
    %112 = vector.multi_reduction <add>, %1, %cst_42 [1] : vector<8x256xf32> to vector<8xf32>
    %113 = vector.shape_cast %112 : vector<8xf32> to vector<8x1xf32>
    %cst_43 = arith.constant 3.906250e-03 : f32
    %114 = vector.broadcast %cst_43 : f32 to vector<8x1xf32>
    %115 = arith.mulf %113, %114 : vector<8x1xf32>
    %116 = vector.broadcast %115 : vector<8x1xf32> to vector<8x256xf32>
    %117 = arith.subf %1, %116 : vector<8x256xf32>
    %118 = arith.mulf %117, %117 : vector<8x256xf32>
    %cst_44 = arith.constant dense<0.000000e+00> : vector<8xf32>
    %119 = vector.multi_reduction <add>, %118, %cst_44 [1] : vector<8x256xf32> to vector<8xf32>
    %120 = vector.shape_cast %119 : vector<8xf32> to vector<8x1xf32>
    %cst_45 = arith.constant 0.00392156886 : f32
    %121 = vector.broadcast %cst_45 : f32 to vector<8x1xf32>
    %122 = arith.mulf %120, %121 : vector<8x1xf32>
    %cst_46 = arith.constant 9.99999974E-5 : f32
    %123 = vector.broadcast %cst_46 : f32 to vector<8x1xf32>
    %124 = arith.addf %122, %123 : vector<8x1xf32>
    %cst_47 = arith.constant 4.000000e+00 : f32
    %125 = vector.broadcast %cst_47 : f32 to vector<8x1xf32>
    %126 = arith.mulf %125, %124 : vector<8x1xf32>
    %127 = tpu.reciprocal %126 : vector<8x1xf32> -> vector<8x1xf32>
    %128 = vector.broadcast %127 : vector<8x1xf32> to vector<8x256xf32>
    %129 = arith.mulf %118, %128 : vector<8x256xf32>
    %cst_48 = arith.constant 5.000000e-01 : f32
    %130 = vector.broadcast %cst_48 : f32 to vector<8x256xf32>
    %131 = arith.addf %129, %130 : vector<8x256xf32>
    %cst_49 = arith.constant 5.000000e-01 : f32
    %132 = vector.broadcast %cst_49 : f32 to vector<8x256xf32>
    %133 = arith.mulf %132, %131 : vector<8x256xf32>
    %134 = math.tanh %133 : vector<8x256xf32>
    %cst_50 = arith.constant 5.000000e-01 : f32
    %135 = vector.broadcast %cst_50 : f32 to vector<8x256xf32>
    %136 = arith.mulf %135, %134 : vector<8x256xf32>
    %cst_51 = arith.constant 5.000000e-01 : f32
    %137 = vector.broadcast %cst_51 : f32 to vector<8x256xf32>
    %138 = arith.addf %136, %137 : vector<8x256xf32>
    %139 = arith.mulf %1, %138 : vector<8x256xf32>
    %c255_i32_52 = arith.constant 255 : i32
    %140 = tpu.dynamic_rotate %139 by %c255_i32_52 dim 1 : vector<8x256xf32>, i32 -> vector<8x256xf32>
    %c1_i32_53 = arith.constant 1 : i32
    %141 = tpu.dynamic_rotate %139 by %c1_i32_53 dim 1 : vector<8x256xf32>, i32 -> vector<8x256xf32>
    %142 = arith.mulf %140, %4 : vector<8x256xf32>
    %143 = arith.addf %139, %142 : vector<8x256xf32>
    %144 = arith.mulf %141, %7 : vector<8x256xf32>
    %145 = arith.addf %143, %144 : vector<8x256xf32>
    %c248_i32_54 = arith.constant 248 : i32
    %146 = tpu.dynamic_rotate %145 by %c248_i32_54 dim 1 : vector<8x256xf32>, i32 -> vector<8x256xf32>
    %c8_i32_55 = arith.constant 8 : i32
    %147 = tpu.dynamic_rotate %145 by %c8_i32_55 dim 1 : vector<8x256xf32>, i32 -> vector<8x256xf32>
    %148 = arith.mulf %146, %10 : vector<8x256xf32>
    %149 = arith.addf %145, %148 : vector<8x256xf32>
    %150 = arith.mulf %147, %13 : vector<8x256xf32>
    %151 = arith.addf %149, %150 : vector<8x256xf32>
    %c192_i32_56 = arith.constant 192 : i32
    %152 = tpu.dynamic_rotate %151 by %c192_i32_56 dim 1 : vector<8x256xf32>, i32 -> vector<8x256xf32>
    %c64_i32_57 = arith.constant 64 : i32
    %153 = tpu.dynamic_rotate %151 by %c64_i32_57 dim 1 : vector<8x256xf32>, i32 -> vector<8x256xf32>
    %154 = arith.mulf %152, %16 : vector<8x256xf32>
    %155 = arith.addf %151, %154 : vector<8x256xf32>
    %156 = arith.mulf %153, %19 : vector<8x256xf32>
    %157 = arith.addf %155, %156 : vector<8x256xf32>
    %cst_58 = arith.constant 0.0370370373 : f32
    %158 = vector.broadcast %cst_58 : f32 to vector<8x256xf32>
    %159 = arith.mulf %157, %158 : vector<8x256xf32>
    %160 = arith.subf %139, %159 : vector<8x256xf32>
    %cst_59 = arith.constant dense<0.000000e+00> : vector<8x256xf32>
    %161 = tpu.matmul %22, %160, %cst_59 {dimension_numbers = #tpu.dot_dimension_numbers<[1], [0], [0], [1], [0, 0, 1, 1], [], []>, precision = #tpu.contract_precision<fp32>} : vector<8x8xf32>, vector<8x256xf32>, vector<8x256xf32> -> vector<8x256xf32>
    %162 = vector.broadcast %23 : vector<8x1xf32> to vector<8x256xf32>
    %163 = arith.addf %161, %162 : vector<8x256xf32>
    %cst_60 = arith.constant 5.000000e-01 : f32
    %164 = vector.broadcast %cst_60 : f32 to vector<8x256xf32>
    %165 = arith.mulf %164, %163 : vector<8x256xf32>
    %166 = math.tanh %165 : vector<8x256xf32>
    %cst_61 = arith.constant 5.000000e-01 : f32
    %167 = vector.broadcast %cst_61 : f32 to vector<8x256xf32>
    %168 = arith.mulf %167, %166 : vector<8x256xf32>
    %cst_62 = arith.constant 1.500000e+00 : f32
    %169 = vector.broadcast %cst_62 : f32 to vector<8x256xf32>
    %170 = arith.addf %169, %168 : vector<8x256xf32>
    %171 = arith.mulf %139, %170 : vector<8x256xf32>
    %cst_63 = arith.constant dense<0.000000e+00> : vector<8xf32>
    %172 = vector.multi_reduction <add>, %171, %cst_63 [1] : vector<8x256xf32> to vector<8xf32>
    %173 = vector.shape_cast %172 : vector<8xf32> to vector<8x1xf32>
    %cst_64 = arith.constant 3.906250e-03 : f32
    %174 = vector.broadcast %cst_64 : f32 to vector<8x1xf32>
    %175 = arith.mulf %173, %174 : vector<8x1xf32>
    %176 = vector.broadcast %175 : vector<8x1xf32> to vector<8x256xf32>
    %177 = arith.subf %171, %176 : vector<8x256xf32>
    %178 = arith.mulf %177, %177 : vector<8x256xf32>
    %cst_65 = arith.constant dense<0.000000e+00> : vector<8xf32>
    %179 = vector.multi_reduction <add>, %178, %cst_65 [1] : vector<8x256xf32> to vector<8xf32>
    %180 = vector.shape_cast %179 : vector<8xf32> to vector<8x1xf32>
    %cst_66 = arith.constant 0.00392156886 : f32
    %181 = vector.broadcast %cst_66 : f32 to vector<8x1xf32>
    %182 = arith.mulf %180, %181 : vector<8x1xf32>
    %cst_67 = arith.constant 9.99999974E-5 : f32
    %183 = vector.broadcast %cst_67 : f32 to vector<8x1xf32>
    %184 = arith.addf %182, %183 : vector<8x1xf32>
    %cst_68 = arith.constant 4.000000e+00 : f32
    %185 = vector.broadcast %cst_68 : f32 to vector<8x1xf32>
    %186 = arith.mulf %185, %184 : vector<8x1xf32>
    %187 = tpu.reciprocal %186 : vector<8x1xf32> -> vector<8x1xf32>
    %188 = vector.broadcast %187 : vector<8x1xf32> to vector<8x256xf32>
    %189 = arith.mulf %178, %188 : vector<8x256xf32>
    %cst_69 = arith.constant 5.000000e-01 : f32
    %190 = vector.broadcast %cst_69 : f32 to vector<8x256xf32>
    %191 = arith.addf %189, %190 : vector<8x256xf32>
    %cst_70 = arith.constant 5.000000e-01 : f32
    %192 = vector.broadcast %cst_70 : f32 to vector<8x256xf32>
    %193 = arith.mulf %192, %191 : vector<8x256xf32>
    %194 = math.tanh %193 : vector<8x256xf32>
    %cst_71 = arith.constant 5.000000e-01 : f32
    %195 = vector.broadcast %cst_71 : f32 to vector<8x256xf32>
    %196 = arith.mulf %195, %194 : vector<8x256xf32>
    %cst_72 = arith.constant 5.000000e-01 : f32
    %197 = vector.broadcast %cst_72 : f32 to vector<8x256xf32>
    %198 = arith.addf %196, %197 : vector<8x256xf32>
    %199 = arith.mulf %171, %198 : vector<8x256xf32>
    %200 = arith.subf %111, %199 : vector<8x256xf32>
    %201 = math.absf %200 : vector<8x256xf32>
    %cst_73 = arith.constant dense<0.000000e+00> : vector<8xf32>
    %202 = vector.multi_reduction <add>, %201, %cst_73 [1] : vector<8x256xf32> to vector<8xf32>
    %203 = vector.shape_cast %202 : vector<8xf32> to vector<8x1xf32>
    %cst_74 = arith.constant 3.906250e-03 : f32
    %204 = vector.broadcast %cst_74 : f32 to vector<8x1xf32>
    %205 = arith.mulf %203, %204 : vector<8x1xf32>
    %206 = vector.broadcast %205 : vector<8x1xf32> to vector<8x256xf32>
    %207 = arith.subf %201, %206 : vector<8x256xf32>
    %208 = arith.mulf %207, %207 : vector<8x256xf32>
    %cst_75 = arith.constant dense<0.000000e+00> : vector<8xf32>
    %209 = vector.multi_reduction <add>, %208, %cst_75 [1] : vector<8x256xf32> to vector<8xf32>
    %210 = vector.shape_cast %209 : vector<8xf32> to vector<8x1xf32>
    %cst_76 = arith.constant 0.00392156886 : f32
    %211 = vector.broadcast %cst_76 : f32 to vector<8x1xf32>
    %212 = arith.mulf %210, %211 : vector<8x1xf32>
    %cst_77 = arith.constant 9.99999974E-5 : f32
    %213 = vector.broadcast %cst_77 : f32 to vector<8x1xf32>
    %214 = arith.addf %212, %213 : vector<8x1xf32>
    %cst_78 = arith.constant 4.000000e+00 : f32
    %215 = vector.broadcast %cst_78 : f32 to vector<8x1xf32>
    %216 = arith.mulf %215, %214 : vector<8x1xf32>
    %217 = tpu.reciprocal %216 : vector<8x1xf32> -> vector<8x1xf32>
    %218 = vector.broadcast %217 : vector<8x1xf32> to vector<8x256xf32>
    %219 = arith.mulf %208, %218 : vector<8x256xf32>
    %cst_79 = arith.constant 5.000000e-01 : f32
    %220 = vector.broadcast %cst_79 : f32 to vector<8x256xf32>
    %221 = arith.addf %219, %220 : vector<8x256xf32>
    %cst_80 = arith.constant 5.000000e-01 : f32
    %222 = vector.broadcast %cst_80 : f32 to vector<8x256xf32>
    %223 = arith.mulf %222, %221 : vector<8x256xf32>
    %224 = math.tanh %223 : vector<8x256xf32>
    %cst_81 = arith.constant 5.000000e-01 : f32
    %225 = vector.broadcast %cst_81 : f32 to vector<8x256xf32>
    %226 = arith.mulf %225, %224 : vector<8x256xf32>
    %cst_82 = arith.constant 5.000000e-01 : f32
    %227 = vector.broadcast %cst_82 : f32 to vector<8x256xf32>
    %228 = arith.addf %226, %227 : vector<8x256xf32>
    %229 = arith.mulf %201, %228 : vector<8x256xf32>
    %c0_83 = arith.constant 0 : index
    %c0_84 = arith.constant 0 : index
    %230 = vector.load %arg8[%c0_83, %c0_84] : memref<8x256xf32, #tpu.memory_space<vmem>>, vector<8x256xf32>
    tpu.vector_store %arg8[%c0_83, %c0_84], %229 {strides = array<i32>} : memref<8x256xf32, #tpu.memory_space<vmem>>, vector<8x256xf32>,
    return
  }
  func.func @transform_0(%arg0: i32) -> (i32, i32) {
    %c0_i32 = arith.constant 0 : i32
    %c0_i32_0 = arith.constant 0 : i32
    return %arg0, %c0_i32 : i32, i32
  }
  func.func @transform_1(%arg0: i32) -> (i32, i32) {
    %c0_i32 = arith.constant 0 : i32
    %c0_i32_0 = arith.constant 0 : i32
    return %arg0, %c0_i32 : i32, i32
  }
  func.func @transform_2(%arg0: i32) -> (i32, i32) {
    %c0_i32 = arith.constant 0 : i32
    %c0_i32_0 = arith.constant 0 : i32
    %c0_i32_1 = arith.constant 0 : i32
    return %c0_i32, %c0_i32_0 : i32, i32
  }
  func.func @transform_3(%arg0: i32) -> (i32, i32) {
    %c0_i32 = arith.constant 0 : i32
    %c0_i32_0 = arith.constant 0 : i32
    %c0_i32_1 = arith.constant 0 : i32
    return %c0_i32, %c0_i32_0 : i32, i32
  }
  func.func @transform_4(%arg0: i32) -> (i32, i32) {
    %c0_i32 = arith.constant 0 : i32
    %c0_i32_0 = arith.constant 0 : i32
    %c0_i32_1 = arith.constant 0 : i32
    return %c0_i32, %c0_i32_0 : i32, i32
  }
  func.func @transform_5(%arg0: i32) -> (i32, i32) {
    %c0_i32 = arith.constant 0 : i32
    %c0_i32_0 = arith.constant 0 : i32
    %c0_i32_1 = arith.constant 0 : i32
    return %c0_i32, %c0_i32_0 : i32, i32
  }
  func.func @transform_6(%arg0: i32) -> (i32, i32) {
    %c0_i32 = arith.constant 0 : i32
    %c0_i32_0 = arith.constant 0 : i32
    %c0_i32_1 = arith.constant 0 : i32
    return %c0_i32, %c0_i32_0 : i32, i32
  }
  func.func @transform_7(%arg0: i32) -> (i32, i32) {
    %c0_i32 = arith.constant 0 : i32
    %c0_i32_0 = arith.constant 0 : i32
    return %arg0, %c0_i32 : i32, i32
  }
}

</mosaic_0001>

<llo_original>
// kernel: cbm3d_forward.1
$region0: #{cbm3d_forward.1}
  #allocation0 [shape = 'u32[]', space=smem, size = 0x4, offset = 0x4, fixed_abs, tag = 'smem constant byte address 0x4 - core index']
  #allocation1 [shape = 'u32[72,128]{1,0:T(1,128)}', space=vmem, size = 0x9000, scoped, tag = 'internal scratch']
  %s0 = inlined_call_operand.vmem [shape: f32[8,256], index: 0, kind: input, shape index: {}]
  %s1 = inlined_call_operand.vmem [shape: f32[8,256], index: 1, kind: input, shape index: {}]
  %s2 = inlined_call_operand.vmem [shape: f32[6,256], index: 2, kind: input, shape index: {}]
  %s3 = inlined_call_operand.vmem [shape: f32[8,8], index: 3, kind: input, shape index: {}]
  %s4 = inlined_call_operand.vmem [shape: f32[8,1], index: 4, kind: input, shape index: {}]
  %s5 = inlined_call_operand.vmem [shape: f32[8,8], index: 5, kind: input, shape index: {}]
  %s6 = inlined_call_operand.vmem [shape: f32[8,1], index: 6, kind: input, shape index: {}]
  %s7 = inlined_call_operand.vmem [shape: f32[8,256], index: 7, kind: output, shape index: {}]
  %s8 = sld [smem:[#allocation0]]
  $region38: #{cbm3d_forward.1} parent=0
    _
  %s10 = ssub.s32 1, %s8
  %s11 = scalar_select 0, %s10, %s8
  // Predicated region
  $region2: #{cbm3d_forward.1} parent=0 // pred_check
    _
  $region3: #{cbm3d_forward.1} parent=0 // pred_check_branch
    %13 = sbr.rel (0) target = $region5
  $region4: #{cbm3d_forward.1} parent=0 // pred_region
    _
  $region5: #{cbm3d_forward.1} parent=0 // pred_fallthru
    _
  // Predicated region
  $region6: #{cbm3d_forward.1} parent=0 // pred_check
    _
  $region7: #{cbm3d_forward.1} parent=0 // pred_check_branch
    %15 = sbr.rel (0) target = $region9
  $region8: #{cbm3d_forward.1} parent=0 // pred_region
    _
  $region9: #{cbm3d_forward.1} parent=0 // pred_fallthru
    _
  // Predicated region
  $region10: #{cbm3d_forward.1} parent=0 // pred_check
    _
  $region11: #{cbm3d_forward.1} parent=0 // pred_check_branch
    %17 = sbr.rel (0) target = $region13
  $region12: #{cbm3d_forward.1} parent=0 // pred_region
    _
  $region13: #{cbm3d_forward.1} parent=0 // pred_fallthru
    _
  // Predicated region
  $region14: #{cbm3d_forward.1} parent=0 // pred_check
    _
  $region15: #{cbm3d_forward.1} parent=0 // pred_check_branch
    %19 = sbr.rel (0) target = $region17
  $region16: #{cbm3d_forward.1} parent=0 // pred_region
    _
  $region17: #{cbm3d_forward.1} parent=0 // pred_fallthru
    _
  // Predicated region
  $region18: #{cbm3d_forward.1} parent=0 // pred_check
    _
  $region19: #{cbm3d_forward.1} parent=0 // pred_check_branch
    %21 = sbr.rel (0) target = $region21
  $region20: #{cbm3d_forward.1} parent=0 // pred_region
    _
  $region21: #{cbm3d_forward.1} parent=0 // pred_fallthru
    _
  // Predicated region
  $region22: #{cbm3d_forward.1} parent=0 // pred_check
    _
  $region23: #{cbm3d_forward.1} parent=0 // pred_check_branch
    %23 = sbr.rel (0) target = $region25
  $region24: #{cbm3d_forward.1} parent=0 // pred_region
    _
  $region25: #{cbm3d_forward.1} parent=0 // pred_fallthru
    _
  // Predicated region
  $region26: #{cbm3d_forward.1} parent=0 // pred_check
    _
  $region27: #{cbm3d_forward.1} parent=0 // pred_check_branch
    %25 = sbr.rel (0) target = $region29
  $region28: #{cbm3d_forward.1} parent=0 // pred_region
    _
  $region29: #{cbm3d_forward.1} parent=0 // pred_fallthru
    _
  %v26 = vld [vmem:[%s0] sm:$0xff]
  %v27 = vld [vmem:[%s0 + $0x8] sm:$0xff]
  %v28 = vld [vmem:[%s1] sm:$0xff]
  %v29 = vld [vmem:[%s1 + $0x8] sm:$0xff]
  %v30 = vld [vmem:[%s2] ss:$8 sm:$0x3]
  %v32 = vperm.slane %v30, 0
  %v33 = vperm.slane %v30, 1
  %s36 = scalar_lea.vmem %s2, 1
  %v37 = vld [vmem:[%s36] ss:$8 sm:$0x3]
  %v39 = vperm.slane %v37, 0
  %v40 = vperm.slane %v37, 1
  %s43 = scalar_lea.vmem %s2, 2
  %v44 = vld [vmem:[%s43] ss:$8 sm:$0x3]
  %v46 = vperm.slane %v44, 0
  %v47 = vperm.slane %v44, 1
  %s50 = scalar_lea.vmem %s2, 3
  %v51 = vld [vmem:[%s50] ss:$8 sm:$0x3]
  %v53 = vperm.slane %v51, 0
  %v54 = vperm.slane %v51, 1
  %s57 = scalar_lea.vmem %s2, 4
  %v58 = vld [vmem:[%s57] ss:$8 sm:$0x3]
  %v60 = vperm.slane %v58, 0
  %v61 = vperm.slane %v58, 1
  %s64 = scalar_lea.vmem %s2, 5
  %v65 = vld [vmem:[%s64] ss:$8 sm:$0x3]
  %v67 = vperm.slane %v65, 0
  %v68 = vperm.slane %v65, 1
  %v71 = vld [vmem:[%s3] sm:$0xff]
  %v72 = vld [vmem:[%s4] sm:$0xff]
  %v73 = vld [vmem:[%s5] sm:$0xff]
  %v74 = vld [vmem:[%s6] sm:$0xff]
  %v75 = vadd.f32 %v26, %v27
  %76 = vadd.xlane.f32.xlu0 %v75
  %v77 = vpop.xlane.xlu0 %76
  %v78 = vmul.f32 %v77, 0.00390625
  %v79 = vsub.f32 %v26, %v78
  %v80 = vsub.f32 %v27, %v78
  %v81 = vmul.f32 %v79, %v79
  %v82 = vmul.f32 %v80, %v80
  %v83 = vadd.f32 %v81, %v82
  %84 = vadd.xlane.f32.xlu0 %v83
  %v85 = vpop.xlane.xlu0 %84
  %v86 = vmul.f32 %v85, 0.003921569
  %v87 = vadd.f32 %v86, 0.0001
  %v88 = vmul.f32 %v87, 4.0
  %v89 = vrcp.pop %v88
  %v90 = vmul.f32 %v88, %v89
  %v91 = vsub.f32 1.0, %v90
  %v92 = vmul.f32 %v89, %v91
  %v93 = vadd.f32 %v89, %v92
  %vm94 = vweird.f32 %v88
  %vm95 = vweird.f32 %v89
  %vm96 = vmor %vm94, %vm95
  %v97 = vsel %vm96, %v89, %v93
  %v98 = vand.u32 2147483647, %v88
  %vm99 = vcmp.eq.f32.partialorder %v98, 8.507059e+37
  %v100 = vand.u32 %v88, 2147483648
  %v101 = vor.u32 1.1754944e-38, %v100
  %v102 = vsel %vm99, %v101, %v97
  %v103 = vmul.f32 %v81, %v102
  %v104 = vmul.f32 %v82, %v102
  %v105 = vadd.f32 %v103, 0.5
  %v106 = vadd.f32 %v104, 0.5
  %v107 = vmul.f32 %v105, 0.5
  %v108 = vmul.f32 %v106, 0.5
  %v109 = vtanh.pop %v107
  %v110 = vtanh.pop %v108
  %v111 = vmul.f32 %v109, 0.5
  %v112 = vmul.f32 %v110, 0.5
  %v113 = vadd.f32 %v111, 0.5
  %v114 = vadd.f32 %v112, 0.5
  %v115 = vmul.f32 %v26, %v113
  %v116 = vmul.f32 %v27, %v114
  %117 = vrot.lane.b32.xlu0 %v115, 127
  %v118 = vpop.permute.xlu0 %117
  %119 = vrot.lane.b32.xlu0 %v116, 127
  %v120 = vpop.permute.xlu0 %119
  %v121 = vlaneseq
  %v122 = vand.u32 %v121, 127
  %vm123 = vcmp.lt.s32.totalorder %v122, 127
  %v124 = vsel %vm123, %v118, %v120
  %v125 = vsel %vm123, %v120, %v118
  %126 = vrot.lane.b32.xlu0 %v115, 1
  %v127 = vpop.permute.xlu0 %126
  %128 = vrot.lane.b32.xlu0 %v116, 1
  %v129 = vpop.permute.xlu0 %128
  %vm130 = vcmp.lt.s32.totalorder %v122, 1
  %v131 = vsel %vm130, %v127, %v129
  %v132 = vsel %vm130, %v129, %v127
  %v133 = vmul.f32 %v124, %v32
  %v134 = vmul.f32 %v125, %v33
  %v135 = vadd.f32 %v115, %v133
  %v136 = vadd.f32 %v116, %v134
  %v137 = vmul.f32 %v132, %v39
  %v138 = vmul.f32 %v131, %v40
  %v139 = vadd.f32 %v135, %v137
  %v140 = vadd.f32 %v136, %v138
  %141 = vrot.lane.b32.xlu0 %v139, 120
  %v142 = vpop.permute.xlu0 %141
  %143 = vrot.lane.b32.xlu0 %v140, 120
  %v144 = vpop.permute.xlu0 %143
  %vm145 = vcmp.lt.s32.totalorder %v122, 120
  %v146 = vsel %vm145, %v142, %v144
  %v147 = vsel %vm145, %v144, %v142
  %148 = vrot.lane.b32.xlu0 %v139, 8
  %v149 = vpop.permute.xlu0 %148
  %150 = vrot.lane.b32.xlu0 %v140, 8
  %v151 = vpop.permute.xlu0 %150
  %vm152 = vcmp.lt.s32.totalorder %v122, 8
  %v153 = vsel %vm152, %v149, %v151
  %v154 = vsel %vm152, %v151, %v149
  %v155 = vmul.f32 %v146, %v46
  %v156 = vmul.f32 %v147, %v47
  %v157 = vadd.f32 %v139, %v155
  %v158 = vadd.f32 %v140, %v156
  %v159 = vmul.f32 %v154, %v53
  %v160 = vmul.f32 %v153, %v54
  %v161 = vadd.f32 %v157, %v159
  %v162 = vadd.f32 %v158, %v160
  %163 = vrot.lane.b32.xlu0 %v161, 64
  %v164 = vpop.permute.xlu0 %163
  %165 = vrot.lane.b32.xlu0 %v162, 64
  %v166 = vpop.permute.xlu0 %165
  %vm167 = vcmp.lt.s32.totalorder %v122, 64
  %v168 = vsel %vm167, %v164, %v166
  %v169 = vsel %vm167, %v166, %v164
  %v170 = vmul.f32 %v168, %v60
  %v171 = vmul.f32 %v169, %v61
  %v172 = vadd.f32 %v161, %v170
  %v173 = vadd.f32 %v162, %v171
  %v174 = vmul.f32 %v169, %v67
  %v175 = vmul.f32 %v168, %v68
  %v176 = vadd.f32 %v172, %v174
  %v177 = vadd.f32 %v173, %v175
  %v178 = vmul.f32 %v176, 0.037037037
  %v179 = vmul.f32 %v177, 0.037037037
  %v180 = vsub.f32 %v115, %v178
  %v181 = vsub.f32 %v116, %v179
  %183 = vset.pattern.permute.xlu0 0
  %184 = vperm.xlu0 %183, %v72
  %v185 = vpop.permute.xlu0 %184
  %vm187 = vcmask 64512
  %v189 = vsel %vm187, %v71, 0
  %191 = vmatpush.msra.mxu0 0.0
  %192 = vmatpush.msra.mxu0 0.0
  %193 = vmatpush.msra.mxu0 0.0
  %194 = vmatpush.msra.mxu0 0.0
  %195 = vmatpush.msra.mxu0 0.0
  %196 = vmatpush.msra.mxu0 0.0
  %197 = vmatpush.msra.mxu0 0.0
  %198 = vmatpush.msra.mxu0 0.0
  %199 = vmatpush.msra.mxu0 0.0
  %200 = vmatpush.msra.mxu0 0.0
  %201 = vmatpush.msra.mxu0 0.0
  %202 = vmatpush.msra.mxu0 0.0
  %203 = vmatpush.msra.mxu0 0.0
  %204 = vmatpush.msra.mxu0 0.0
  %205 = vmatpush.msra.mxu0 0.0
  %v206 = vand.u32 %v180, 4294901760
  %207 = vmatpush.msra.mxu0 %v206
  %v208 = vand.u32 %v189, 4294901760
  %v209 = vsub.f32 %v189, %v208
  %v210 = vand.u32 %v209, 4294901760
  %v211 = vsub.f32 %v209, %v210
  %v212 = vand.u32 %v211, 4294901760
  %213 = vmatmul.f32.gmra.mxu0 %v212
  %v214 = vpop.f32.mrf.mxu0
  %v215 = vadd.f32 %v185, %v214
  %216 = vdwg.mxu0
  %217 = vmatpush.msra.mxu0 0.0
  %218 = vmatpush.msra.mxu0 0.0
  %219 = vmatpush.msra.mxu0 0.0
  %220 = vmatpush.msra.mxu0 0.0
  %221 = vmatpush.msra.mxu0 0.0
  %222 = vmatpush.msra.mxu0 0.0
  %223 = vmatpush.msra.mxu0 0.0
  %224 = vmatpush.msra.mxu0 0.0
  %225 = vmatpush.msra.mxu0 0.0
  %226 = vmatpush.msra.mxu0 0.0
  %227 = vmatpush.msra.mxu0 0.0
  %228 = vmatpush.msra.mxu0 0.0
  %229 = vmatpush.msra.mxu0 0.0
  %230 = vmatpush.msra.mxu0 0.0
  %231 = vmatpush.msra.mxu0 0.0
  %v232 = vand.u32 %v180, 4294901760
  %v233 = vsub.f32 %v180, %v232
  %v234 = vand.u32 %v233, 4294901760
  %v235 = vsub.f32 %v233, %v234
  %v236 = vand.u32 %v235, 4294901760
  %237 = vmatpush.msra.mxu0 %v236
  %v238 = vand.u32 %v189, 4294901760
  %239 = vmatmul.f32.gmra.mxu0 %v238
  %v240 = vpop.f32.mrf.mxu0
  %v241 = vadd.f32 %v215, %v240
  %242 = vdwg.mxu0
  %243 = vmatpush.msra.mxu0 0.0
  %244 = vmatpush.msra.mxu0 0.0
  %245 = vmatpush.msra.mxu0 0.0
  %246 = vmatpush.msra.mxu0 0.0
  %247 = vmatpush.msra.mxu0 0.0
  %248 = vmatpush.msra.mxu0 0.0
  %249 = vmatpush.msra.mxu0 0.0
  %250 = vmatpush.msra.mxu0 0.0
  %251 = vmatpush.msra.mxu0 0.0
  %252 = vmatpush.msra.mxu0 0.0
  %253 = vmatpush.msra.mxu0 0.0
  %254 = vmatpush.msra.mxu0 0.0
  %255 = vmatpush.msra.mxu0 0.0
  %256 = vmatpush.msra.mxu0 0.0
  %257 = vmatpush.msra.mxu0 0.0
  %v258 = vand.u32 %v180, 4294901760
  %v259 = vsub.f32 %v180, %v258
  %260 = vmatpush.msra.mxu0 %v259
  %v261 = vand.u32 %v189, 4294901760
  %v262 = vsub.f32 %v189, %v261
  %263 = vmatmul.f32.gmra.mxu0 %v262
  %v264 = vpop.f32.mrf.mxu0
  %v265 = vadd.f32 %v241, %v264
  %266 = vdwg.mxu0
  %267 = vmatpush.msra.mxu0 0.0
  %268 = vmatpush.msra.mxu0 0.0
  %269 = vmatpush.msra.mxu0 0.0
  %270 = vmatpush.msra.mxu0 0.0
  %271 = vmatpush.msra.mxu0 0.0
  %272 = vmatpush.msra.mxu0 0.0
  %273 = vmatpush.msra.mxu0 0.0
  %274 = vmatpush.msra.mxu0 0.0
  %275 = vmatpush.msra.mxu0 0.0
  %276 = vmatpush.msra.mxu0 0.0
  %277 = vmatpush.msra.mxu0 0.0
  %278 = vmatpush.msra.mxu0 0.0
  %279 = vmatpush.msra.mxu0 0.0
  %280 = vmatpush.msra.mxu0 0.0
  %281 = vmatpush.msra.mxu0 0.0
  %v282 = vand.u32 %v180, 4294901760
  %283 = vmatpush.msra.mxu0 %v282
  %v284 = vand.u32 %v189, 4294901760
  %v285 = vsub.f32 %v189, %v284
  %v286 = vand.u32 %v285, 4294901760
  %287 = vmatmul.f32.gmra.mxu0 %v286
  %v288 = vpop.f32.mrf.mxu0
  %v289 = vadd.f32 %v265, %v288
  %290 = vdwg.mxu0
  %291 = vmatpush.msra.mxu0 0.0
  %292 = vmatpush.msra.mxu0 0.0
  %293 = vmatpush.msra.mxu0 0.0
  %294 = vmatpush.msra.mxu0 0.0
  %295 = vmatpush.msra.mxu0 0.0
  %296 = vmatpush.msra.mxu0 0.0
  %297 = vmatpush.msra.mxu0 0.0
  %298 = vmatpush.msra.mxu0 0.0
  %299 = vmatpush.msra.mxu0 0.0
  %300 = vmatpush.msra.mxu0 0.0
  %301 = vmatpush.msra.mxu0 0.0
  %302 = vmatpush.msra.mxu0 0.0
  %303 = vmatpush.msra.mxu0 0.0
  %304 = vmatpush.msra.mxu0 0.0
  %305 = vmatpush.msra.mxu0 0.0
  %v306 = vand.u32 %v180, 4294901760
  %v307 = vsub.f32 %v180, %v306
  %v308 = vand.u32 %v307, 4294901760
  %309 = vmatpush.msra.mxu0 %v308
  %v310 = vand.u32 %v189, 4294901760
  %311 = vmatmul.f32.gmra.mxu0 %v310
  %v312 = vpop.f32.mrf.mxu0
  %v313 = vadd.f32 %v289, %v312
  %314 = vdwg.mxu0
  %315 = vmatpush.msra.mxu0 0.0
  %316 = vmatpush.msra.mxu0 0.0
  %317 = vmatpush.msra.mxu0 0.0
  %318 = vmatpush.msra.mxu0 0.0
  %319 = vmatpush.msra.mxu0 0.0
  %320 = vmatpush.msra.mxu0 0.0
  %321 = vmatpush.msra.mxu0 0.0
  %322 = vmatpush.msra.mxu0 0.0
  %323 = vmatpush.msra.mxu0 0.0
  %324 = vmatpush.msra.mxu0 0.0
  %325 = vmatpush.msra.mxu0 0.0
  %326 = vmatpush.msra.mxu0 0.0
  %327 = vmatpush.msra.mxu0 0.0
  %328 = vmatpush.msra.mxu0 0.0
  %329 = vmatpush.msra.mxu0 0.0
  %v330 = vand.u32 %v180, 4294901760
  %331 = vmatpush.msra.mxu0 %v330
  %v332 = vand.u32 %v189, 4294901760
  %333 = vmatmul.f32.gmra.mxu0 %v332
  %v334 = vpop.f32.mrf.mxu0
  %v335 = vadd.f32 %v313, %v334
  %336 = vdwg.mxu0
  %337 = vmatpush.msra.mxu0 0.0
  %338 = vmatpush.msra.mxu0 0.0
  %339 = vmatpush.msra.mxu0 0.0
  %340 = vmatpush.msra.mxu0 0.0
  %341 = vmatpush.msra.mxu0 0.0
  %342 = vmatpush.msra.mxu0 0.0
  %343 = vmatpush.msra.mxu0 0.0
  %344 = vmatpush.msra.mxu0 0.0
  %345 = vmatpush.msra.mxu0 0.0
  %346 = vmatpush.msra.mxu0 0.0
  %347 = vmatpush.msra.mxu0 0.0
  %348 = vmatpush.msra.mxu0 0.0
  %349 = vmatpush.msra.mxu0 0.0
  %350 = vmatpush.msra.mxu0 0.0
  %351 = vmatpush.msra.mxu0 0.0
  %v352 = vand.u32 %v181, 4294901760
  %353 = vmatpush.msra.mxu0 %v352
  %v354 = vand.u32 %v189, 4294901760
  %v355 = vsub.f32 %v189, %v354
  %v356 = vand.u32 %v355, 4294901760
  %v357 = vsub.f32 %v355, %v356
  %v358 = vand.u32 %v357, 4294901760
  %359 = vmatmul.f32.gmra.mxu0 %v358
  %v360 = vpop.f32.mrf.mxu0
  %v361 = vadd.f32 %v185, %v360
  %362 = vdwg.mxu0
  %363 = vmatpush.msra.mxu0 0.0
  %364 = vmatpush.msra.mxu0 0.0
  %365 = vmatpush.msra.mxu0 0.0
  %366 = vmatpush.msra.mxu0 0.0
  %367 = vmatpush.msra.mxu0 0.0
  %368 = vmatpush.msra.mxu0 0.0
  %369 = vmatpush.msra.mxu0 0.0
  %370 = vmatpush.msra.mxu0 0.0
  %371 = vmatpush.msra.mxu0 0.0
  %372 = vmatpush.msra.mxu0 0.0
  %373 = vmatpush.msra.mxu0 0.0
  %374 = vmatpush.msra.mxu0 0.0
  %375 = vmatpush.msra.mxu0 0.0
  %376 = vmatpush.msra.mxu0 0.0
  %377 = vmatpush.msra.mxu0 0.0
  %v378 = vand.u32 %v181, 4294901760
  %v379 = vsub.f32 %v181, %v378
  %v380 = vand.u32 %v379, 4294901760
  %v381 = vsub.f32 %v379, %v380
  %v382 = vand.u32 %v381, 4294901760
  %383 = vmatpush.msra.mxu0 %v382
  %v384 = vand.u32 %v189, 4294901760
  %385 = vmatmul.f32.gmra.mxu0 %v384
  %v386 = vpop.f32.mrf.mxu0
  %v387 = vadd.f32 %v361, %v386
  %388 = vdwg.mxu0
  %389 = vmatpush.msra.mxu0 0.0
  %390 = vmatpush.msra.mxu0 0.0
  %391 = vmatpush.msra.mxu0 0.0
  %392 = vmatpush.msra.mxu0 0.0
  %393 = vmatpush.msra.mxu0 0.0
  %394 = vmatpush.msra.mxu0 0.0
  %395 = vmatpush.msra.mxu0 0.0
  %396 = vmatpush.msra.mxu0 0.0
  %397 = vmatpush.msra.mxu0 0.0
  %398 = vmatpush.msra.mxu0 0.0
  %399 = vmatpush.msra.mxu0 0.0
  %400 = vmatpush.msra.mxu0 0.0
  %401 = vmatpush.msra.mxu0 0.0
  %402 = vmatpush.msra.mxu0 0.0
  %403 = vmatpush.msra.mxu0 0.0
  %v404 = vand.u32 %v181, 4294901760
  %v405 = vsub.f32 %v181, %v404
  %406 = vmatpush.msra.mxu0 %v405
  %v407 = vand.u32 %v189, 4294901760
  %v408 = vsub.f32 %v189, %v407
  %409 = vmatmul.f32.gmra.mxu0 %v408
  %v410 = vpop.f32.mrf.mxu0
  %v411 = vadd.f32 %v387, %v410
  %412 = vdwg.mxu0
  %413 = vmatpush.msra.mxu0 0.0
  %414 = vmatpush.msra.mxu0 0.0
  %415 = vmatpush.msra.mxu0 0.0
  %416 = vmatpush.msra.mxu0 0.0
  %417 = vmatpush.msra.mxu0 0.0
  %418 = vmatpush.msra.mxu0 0.0
  %419 = vmatpush.msra.mxu0 0.0
  %420 = vmatpush.msra.mxu0 0.0
  %421 = vmatpush.msra.mxu0 0.0
  %422 = vmatpush.msra.mxu0 0.0
  %423 = vmatpush.msra.mxu0 0.0
  %424 = vmatpush.msra.mxu0 0.0
  %425 = vmatpush.msra.mxu0 0.0
  %426 = vmatpush.msra.mxu0 0.0
  %427 = vmatpush.msra.mxu0 0.0
  %v428 = vand.u32 %v181, 4294901760
  %429 = vmatpush.msra.mxu0 %v428
  %v430 = vand.u32 %v189, 4294901760
  %v431 = vsub.f32 %v189, %v430
  %v432 = vand.u32 %v431, 4294901760
  %433 = vmatmul.f32.gmra.mxu0 %v432
  %v434 = vpop.f32.mrf.mxu0
  %v435 = vadd.f32 %v411, %v434
  %436 = vdwg.mxu0
  %437 = vmatpush.msra.mxu0 0.0
  %438 = vmatpush.msra.mxu0 0.0
  %439 = vmatpush.msra.mxu0 0.0
  %440 = vmatpush.msra.mxu0 0.0
  %441 = vmatpush.msra.mxu0 0.0
  %442 = vmatpush.msra.mxu0 0.0
  %443 = vmatpush.msra.mxu0 0.0
  %444 = vmatpush.msra.mxu0 0.0
  %445 = vmatpush.msra.mxu0 0.0
  %446 = vmatpush.msra.mxu0 0.0
  %447 = vmatpush.msra.mxu0 0.0
  %448 = vmatpush.msra.mxu0 0.0
  %449 = vmatpush.msra.mxu0 0.0
  %450 = vmatpush.msra.mxu0 0.0
  %451 = vmatpush.msra.mxu0 0.0
  %v452 = vand.u32 %v181, 4294901760
  %v453 = vsub.f32 %v181, %v452
  %v454 = vand.u32 %v453, 4294901760
  %455 = vmatpush.msra.mxu0 %v454
  %v456 = vand.u32 %v189, 4294901760
  %457 = vmatmul.f32.gmra.mxu0 %v456
  %v458 = vpop.f32.mrf.mxu0
  %v459 = vadd.f32 %v435, %v458
  %460 = vdwg.mxu0
  %461 = vmatpush.msra.mxu0 0.0
  %462 = vmatpush.msra.mxu0 0.0
  %463 = vmatpush.msra.mxu0 0.0
  %464 = vmatpush.msra.mxu0 0.0
  %465 = vmatpush.msra.mxu0 0.0
  %466 = vmatpush.msra.mxu0 0.0
  %467 = vmatpush.msra.mxu0 0.0
  %468 = vmatpush.msra.mxu0 0.0
  %469 = vmatpush.msra.mxu0 0.0
  %470 = vmatpush.msra.mxu0 0.0
  %471 = vmatpush.msra.mxu0 0.0
  %472 = vmatpush.msra.mxu0 0.0
  %473 = vmatpush.msra.mxu0 0.0
  %474 = vmatpush.msra.mxu0 0.0
  %475 = vmatpush.msra.mxu0 0.0
  %v476 = vand.u32 %v181, 4294901760
  %477 = vmatpush.msra.mxu0 %v476
  %v478 = vand.u32 %v189, 4294901760
  %479 = vmatmul.f32.gmra.mxu0 %v478
  %v480 = vpop.f32.mrf.mxu0
  %v481 = vadd.f32 %v459, %v480
  %482 = vdwg.mxu0
  %v483 = vmul.f32 %v335, 0.5
  %v484 = vmul.f32 %v481, 0.5
  %v485 = vtanh.pop %v483
  %v486 = vtanh.pop %v484
  %v487 = vmul.f32 %v485, 0.5
  %v488 = vmul.f32 %v486, 0.5
  %v489 = vadd.f32 %v487, 1.5
  %v490 = vadd.f32 %v488, 1.5
  %v491 = vmul.f32 %v115, %v489
  %v492 = vmul.f32 %v116, %v490
  %v493 = vadd.f32 %v491, %v492
  %494 = vadd.xlane.f32.xlu0 %v493
  %v495 = vpop.xlane.xlu0 %494
  %v496 = vmul.f32 %v495, 0.00390625
  %v497 = vsub.f32 %v491, %v496
  %v498 = vsub.f32 %v492, %v496
  %v499 = vmul.f32 %v497, %v497
  %v500 = vmul.f32 %v498, %v498
  %v501 = vadd.f32 %v499, %v500
  %502 = vadd.xlane.f32.xlu0 %v501
  %v503 = vpop.xlane.xlu0 %502
  %v504 = vmul.f32 %v503, 0.003921569
  %v505 = vadd.f32 %v504, 0.0001
  %v506 = vmul.f32 %v505, 4.0
  %v507 = vrcp.pop %v506
  %v508 = vmul.f32 %v506, %v507
  %v509 = vsub.f32 1.0, %v508
  %v510 = vmul.f32 %v507, %v509
  %v511 = vadd.f32 %v507, %v510
  %vm512 = vweird.f32 %v506
  %vm513 = vweird.f32 %v507
  %vm514 = vmor %vm512, %vm513
  %v515 = vsel %vm514, %v507, %v511
  %v516 = vand.u32 2147483647, %v506
  %vm517 = vcmp.eq.f32.partialorder %v516, 8.507059e+37
  %v518 = vand.u32 %v506, 2147483648
  %v519 = vor.u32 1.1754944e-38, %v518
  %v520 = vsel %vm517, %v519, %v515
  %v521 = vmul.f32 %v499, %v520
  %v522 = vmul.f32 %v500, %v520
  %v523 = vadd.f32 %v521, 0.5
  %v524 = vadd.f32 %v522, 0.5
  %v525 = vmul.f32 %v523, 0.5
  %v526 = vmul.f32 %v524, 0.5
  %v527 = vtanh.pop %v525
  %v528 = vtanh.pop %v526
  %v529 = vmul.f32 %v527, 0.5
  %v530 = vmul.f32 %v528, 0.5
  %v531 = vadd.f32 %v529, 0.5
  %v532 = vadd.f32 %v530, 0.5
  %v533 = vmul.f32 %v491, %v531
  %v534 = vmul.f32 %v492, %v532
  %v535 = vadd.f32 %v28, %v29
  %536 = vadd.xlane.f32.xlu0 %v535
  %v537 = vpop.xlane.xlu0 %536
  %v538 = vmul.f32 %v537, 0.00390625
  %v539 = vsub.f32 %v28, %v538
  %v540 = vsub.f32 %v29, %v538
  %v541 = vmul.f32 %v539, %v539
  %v542 = vmul.f32 %v540, %v540
  %v543 = vadd.f32 %v541, %v542
  %544 = vadd.xlane.f32.xlu0 %v543
  %v545 = vpop.xlane.xlu0 %544
  %v546 = vmul.f32 %v545, 0.003921569
  %v547 = vadd.f32 %v546, 0.0001
  %v548 = vmul.f32 %v547, 4.0
  %v549 = vrcp.pop %v548
  %v550 = vmul.f32 %v548, %v549
  %v551 = vsub.f32 1.0, %v550
  %v552 = vmul.f32 %v549, %v551
  %v553 = vadd.f32 %v549, %v552
  %vm554 = vweird.f32 %v548
  %vm555 = vweird.f32 %v549
  %vm556 = vmor %vm554, %vm555
  %v557 = vsel %vm556, %v549, %v553
  %v558 = vand.u32 2147483647, %v548
  %vm559 = vcmp.eq.f32.partialorder %v558, 8.507059e+37
  %v560 = vand.u32 %v548, 2147483648
  %v561 = vor.u32 1.1754944e-38, %v560
  %v562 = vsel %vm559, %v561, %v557
  %v563 = vmul.f32 %v541, %v562
  %v564 = vmul.f32 %v542, %v562
  %v565 = vadd.f32 %v563, 0.5
  %v566 = vadd.f32 %v564, 0.5
  %v567 = vmul.f32 %v565, 0.5
  %v568 = vmul.f32 %v566, 0.5
  %v569 = vtanh.pop %v567
  %v570 = vtanh.pop %v568
  %v571 = vmul.f32 %v569, 0.5
  %v572 = vmul.f32 %v570, 0.5
  %v573 = vadd.f32 %v571, 0.5
  %v574 = vadd.f32 %v572, 0.5
  %v575 = vmul.f32 %v28, %v573
  %v576 = vmul.f32 %v29, %v574
  %577 = vrot.lane.b32.xlu0 %v575, 127
  %v578 = vpop.permute.xlu0 %577
  %579 = vrot.lane.b32.xlu0 %v576, 127
  %v580 = vpop.permute.xlu0 %579
  %v581 = vsel %vm123, %v578, %v580
  %v582 = vsel %vm123, %v580, %v578
  %583 = vrot.lane.b32.xlu0 %v575, 1
  %v584 = vpop.permute.xlu0 %583
  %585 = vrot.lane.b32.xlu0 %v576, 1
  %v586 = vpop.permute.xlu0 %585
  %v587 = vsel %vm130, %v584, %v586
  %v588 = vsel %vm130, %v586, %v584
  %v589 = vmul.f32 %v581, %v32
  %v590 = vmul.f32 %v582, %v33
  %v591 = vadd.f32 %v575, %v589
  %v592 = vadd.f32 %v576, %v590
  %v593 = vmul.f32 %v588, %v39
  %v594 = vmul.f32 %v587, %v40
  %v595 = vadd.f32 %v591, %v593
  %v596 = vadd.f32 %v592, %v594
  %597 = vrot.lane.b32.xlu0 %v595, 120
  %v598 = vpop.permute.xlu0 %597
  %599 = vrot.lane.b32.xlu0 %v596, 120
  %v600 = vpop.permute.xlu0 %599
  %v601 = vsel %vm145, %v598, %v600
  %v602 = vsel %vm145, %v600, %v598
  %603 = vrot.lane.b32.xlu0 %v595, 8
  %v604 = vpop.permute.xlu0 %603
  %605 = vrot.lane.b32.xlu0 %v596, 8
  %v606 = vpop.permute.xlu0 %605
  %v607 = vsel %vm152, %v604, %v606
  %v608 = vsel %vm152, %v606, %v604
  %v609 = vmul.f32 %v601, %v46
  %v610 = vmul.f32 %v602, %v47
  %v611 = vadd.f32 %v595, %v609
  %v612 = vadd.f32 %v596, %v610
  %v613 = vmul.f32 %v608, %v53
  %v614 = vmul.f32 %v607, %v54
  %v615 = vadd.f32 %v611, %v613
  %v616 = vadd.f32 %v612, %v614
  %617 = vrot.lane.b32.xlu0 %v615, 64
  %v618 = vpop.permute.xlu0 %617
  %619 = vrot.lane.b32.xlu0 %v616, 64
  %v620 = vpop.permute.xlu0 %619
  %v621 = vsel %vm167, %v618, %v620
  %v622 = vsel %vm167, %v620, %v618
  %v623 = vmul.f32 %v621, %v60
  %v624 = vmul.f32 %v622, %v61
  %v625 = vadd.f32 %v615, %v623
  %v626 = vadd.f32 %v616, %v624
  %v627 = vmul.f32 %v622, %v67
  %v628 = vmul.f32 %v621, %v68
  %v629 = vadd.f32 %v625, %v627
  %v630 = vadd.f32 %v626, %v628
  %v631 = vmul.f32 %v629, 0.037037037
  %v632 = vmul.f32 %v630, 0.037037037
  %v633 = vsub.f32 %v575, %v631
  %v634 = vsub.f32 %v576, %v632
  %636 = vset.pattern.permute.xlu0 0
  %637 = vperm.xlu0 %636, %v74
  %v638 = vpop.permute.xlu0 %637
  %v641 = vsel %vm187, %v73, 0
  %643 = vmatpush.msra.mxu0 0.0
  %644 = vmatpush.msra.mxu0 0.0
  %645 = vmatpush.msra.mxu0 0.0
  %646 = vmatpush.msra.mxu0 0.0
  %647 = vmatpush.msra.mxu0 0.0
  %648 = vmatpush.msra.mxu0 0.0
  %649 = vmatpush.msra.mxu0 0.0
  %650 = vmatpush.msra.mxu0 0.0
  %651 = vmatpush.msra.mxu0 0.0
  %652 = vmatpush.msra.mxu0 0.0
  %653 = vmatpush.msra.mxu0 0.0
  %654 = vmatpush.msra.mxu0 0.0
  %655 = vmatpush.msra.mxu0 0.0
  %656 = vmatpush.msra.mxu0 0.0
  %657 = vmatpush.msra.mxu0 0.0
  %v658 = vand.u32 %v633, 4294901760
  %659 = vmatpush.msra.mxu0 %v658
  %v660 = vand.u32 %v641, 4294901760
  %v661 = vsub.f32 %v641, %v660
  %v662 = vand.u32 %v661, 4294901760
  %v663 = vsub.f32 %v661, %v662
  %v664 = vand.u32 %v663, 4294901760
  %665 = vmatmul.f32.gmra.mxu0 %v664
  %v666 = vpop.f32.mrf.mxu0
  %v667 = vadd.f32 %v638, %v666
  %668 = vdwg.mxu0
  %669 = vmatpush.msra.mxu0 0.0
  %670 = vmatpush.msra.mxu0 0.0
  %671 = vmatpush.msra.mxu0 0.0
  %672 = vmatpush.msra.mxu0 0.0
  %673 = vmatpush.msra.mxu0 0.0
  %674 = vmatpush.msra.mxu0 0.0
  %675 = vmatpush.msra.mxu0 0.0
  %676 = vmatpush.msra.mxu0 0.0
  %677 = vmatpush.msra.mxu0 0.0
  %678 = vmatpush.msra.mxu0 0.0
  %679 = vmatpush.msra.mxu0 0.0
  %680 = vmatpush.msra.mxu0 0.0
  %681 = vmatpush.msra.mxu0 0.0
  %682 = vmatpush.msra.mxu0 0.0
  %683 = vmatpush.msra.mxu0 0.0
  %v684 = vand.u32 %v633, 4294901760
  %v685 = vsub.f32 %v633, %v684
  %v686 = vand.u32 %v685, 4294901760
  %v687 = vsub.f32 %v685, %v686
  %v688 = vand.u32 %v687, 4294901760
  %689 = vmatpush.msra.mxu0 %v688
  %v690 = vand.u32 %v641, 4294901760
  %691 = vmatmul.f32.gmra.mxu0 %v690
  %v692 = vpop.f32.mrf.mxu0
  %v693 = vadd.f32 %v667, %v692
  %694 = vdwg.mxu0
  %695 = vmatpush.msra.mxu0 0.0
  %696 = vmatpush.msra.mxu0 0.0
  %697 = vmatpush.msra.mxu0 0.0
  %698 = vmatpush.msra.mxu0 0.0
  %699 = vmatpush.msra.mxu0 0.0
  %700 = vmatpush.msra.mxu0 0.0
  %701 = vmatpush.msra.mxu0 0.0
  %702 = vmatpush.msra.mxu0 0.0
  %703 = vmatpush.msra.mxu0 0.0
  %704 = vmatpush.msra.mxu0 0.0
  %705 = vmatpush.msra.mxu0 0.0
  %706 = vmatpush.msra.mxu0 0.0
  %707 = vmatpush.msra.mxu0 0.0
  %708 = vmatpush.msra.mxu0 0.0
  %709 = vmatpush.msra.mxu0 0.0
  %v710 = vand.u32 %v633, 4294901760
  %v711 = vsub.f32 %v633, %v710
  %712 = vmatpush.msra.mxu0 %v711
  %v713 = vand.u32 %v641, 4294901760
  %v714 = vsub.f32 %v641, %v713
  %715 = vmatmul.f32.gmra.mxu0 %v714
  %v716 = vpop.f32.mrf.mxu0
  %v717 = vadd.f32 %v693, %v716
  %718 = vdwg.mxu0
  %719 = vmatpush.msra.mxu0 0.0
  %720 = vmatpush.msra.mxu0 0.0
  %721 = vmatpush.msra.mxu0 0.0
  %722 = vmatpush.msra.mxu0 0.0
  %723 = vmatpush.msra.mxu0 0.0
  %724 = vmatpush.msra.mxu0 0.0
  %725 = vmatpush.msra.mxu0 0.0
  %726 = vmatpush.msra.mxu0 0.0
  %727 = vmatpush.msra.mxu0 0.0
  %728 = vmatpush.msra.mxu0 0.0
  %729 = vmatpush.msra.mxu0 0.0
  %730 = vmatpush.msra.mxu0 0.0
  %731 = vmatpush.msra.mxu0 0.0
  %732 = vmatpush.msra.mxu0 0.0
  %733 = vmatpush.msra.mxu0 0.0
  %v734 = vand.u32 %v633, 4294901760
  %735 = vmatpush.msra.mxu0 %v734
  %v736 = vand.u32 %v641, 4294901760
  %v737 = vsub.f32 %v641, %v736
  %v738 = vand.u32 %v737, 4294901760
  %739 = vmatmul.f32.gmra.mxu0 %v738
  %v740 = vpop.f32.mrf.mxu0
  %v741 = vadd.f32 %v717, %v740
  %742 = vdwg.mxu0
  %743 = vmatpush.msra.mxu0 0.0
  %744 = vmatpush.msra.mxu0 0.0
  %745 = vmatpush.msra.mxu0 0.0
  %746 = vmatpush.msra.mxu0 0.0
  %747 = vmatpush.msra.mxu0 0.0
  %748 = vmatpush.msra.mxu0 0.0
  %749 = vmatpush.msra.mxu0 0.0
  %750 = vmatpush.msra.mxu0 0.0
  %751 = vmatpush.msra.mxu0 0.0
  %752 = vmatpush.msra.mxu0 0.0
  %753 = vmatpush.msra.mxu0 0.0
  %754 = vmatpush.msra.mxu0 0.0
  %755 = vmatpush.msra.mxu0 0.0
  %756 = vmatpush.msra.mxu0 0.0
  %757 = vmatpush.msra.mxu0 0.0
  %v758 = vand.u32 %v633, 4294901760
  %v759 = vsub.f32 %v633, %v758
  %v760 = vand.u32 %v759, 4294901760
  %761 = vmatpush.msra.mxu0 %v760
  %v762 = vand.u32 %v641, 4294901760
  %763 = vmatmul.f32.gmra.mxu0 %v762
  %v764 = vpop.f32.mrf.mxu0
  %v765 = vadd.f32 %v741, %v764
  %766 = vdwg.mxu0
  %767 = vmatpush.msra.mxu0 0.0
  %768 = vmatpush.msra.mxu0 0.0
  %769 = vmatpush.msra.mxu0 0.0
  %770 = vmatpush.msra.mxu0 0.0
  %771 = vmatpush.msra.mxu0 0.0
  %772 = vmatpush.msra.mxu0 0.0
  %773 = vmatpush.msra.mxu0 0.0
  %774 = vmatpush.msra.mxu0 0.0
  %775 = vmatpush.msra.mxu0 0.0
  %776 = vmatpush.msra.mxu0 0.0
  %777 = vmatpush.msra.mxu0 0.0
  %778 = vmatpush.msra.mxu0 0.0
  %779 = vmatpush.msra.mxu0 0.0
  %780 = vmatpush.msra.mxu0 0.0
  %781 = vmatpush.msra.mxu0 0.0
  %v782 = vand.u32 %v633, 4294901760
  %783 = vmatpush.msra.mxu0 %v782
  %v784 = vand.u32 %v641, 4294901760
  %785 = vmatmul.f32.gmra.mxu0 %v784
  %v786 = vpop.f32.mrf.mxu0
  %v787 = vadd.f32 %v765, %v786
  %788 = vdwg.mxu0
  %789 = vmatpush.msra.mxu0 0.0
  %790 = vmatpush.msra.mxu0 0.0
  %791 = vmatpush.msra.mxu0 0.0
  %792 = vmatpush.msra.mxu0 0.0
  %793 = vmatpush.msra.mxu0 0.0
  %794 = vmatpush.msra.mxu0 0.0
  %795 = vmatpush.msra.mxu0 0.0
  %796 = vmatpush.msra.mxu0 0.0
  %797 = vmatpush.msra.mxu0 0.0
  %798 = vmatpush.msra.mxu0 0.0
  %799 = vmatpush.msra.mxu0 0.0
  %800 = vmatpush.msra.mxu0 0.0
  %801 = vmatpush.msra.mxu0 0.0
  %802 = vmatpush.msra.mxu0 0.0
  %803 = vmatpush.msra.mxu0 0.0
  %v804 = vand.u32 %v634, 4294901760
  %805 = vmatpush.msra.mxu0 %v804
  %v806 = vand.u32 %v641, 4294901760
  %v807 = vsub.f32 %v641, %v806
  %v808 = vand.u32 %v807, 4294901760
  %v809 = vsub.f32 %v807, %v808
  %v810 = vand.u32 %v809, 4294901760
  %811 = vmatmul.f32.gmra.mxu0 %v810
  %v812 = vpop.f32.mrf.mxu0
  %v813 = vadd.f32 %v638, %v812
  %814 = vdwg.mxu0
  %815 = vmatpush.msra.mxu0 0.0
  %816 = vmatpush.msra.mxu0 0.0
  %817 = vmatpush.msra.mxu0 0.0
  %818 = vmatpush.msra.mxu0 0.0
  %819 = vmatpush.msra.mxu0 0.0
  %820 = vmatpush.msra.mxu0 0.0
  %821 = vmatpush.msra.mxu0 0.0
  %822 = vmatpush.msra.mxu0 0.0
  %823 = vmatpush.msra.mxu0 0.0
  %824 = vmatpush.msra.mxu0 0.0
  %825 = vmatpush.msra.mxu0 0.0
  %826 = vmatpush.msra.mxu0 0.0
  %827 = vmatpush.msra.mxu0 0.0
  %828 = vmatpush.msra.mxu0 0.0
  %829 = vmatpush.msra.mxu0 0.0
  %v830 = vand.u32 %v634, 4294901760
  %v831 = vsub.f32 %v634, %v830
  %v832 = vand.u32 %v831, 4294901760
  %v833 = vsub.f32 %v831, %v832
  %v834 = vand.u32 %v833, 4294901760
  %835 = vmatpush.msra.mxu0 %v834
  %v836 = vand.u32 %v641, 4294901760
  %837 = vmatmul.f32.gmra.mxu0 %v836
  %v838 = vpop.f32.mrf.mxu0
  %v839 = vadd.f32 %v813, %v838
  %840 = vdwg.mxu0
  %841 = vmatpush.msra.mxu0 0.0
  %842 = vmatpush.msra.mxu0 0.0
  %843 = vmatpush.msra.mxu0 0.0
  %844 = vmatpush.msra.mxu0 0.0
  %845 = vmatpush.msra.mxu0 0.0
  %846 = vmatpush.msra.mxu0 0.0
  %847 = vmatpush.msra.mxu0 0.0
  %848 = vmatpush.msra.mxu0 0.0
  %849 = vmatpush.msra.mxu0 0.0
  %850 = vmatpush.msra.mxu0 0.0
  %851 = vmatpush.msra.mxu0 0.0
  %852 = vmatpush.msra.mxu0 0.0
  %853 = vmatpush.msra.mxu0 0.0
  %854 = vmatpush.msra.mxu0 0.0
  %855 = vmatpush.msra.mxu0 0.0
  %v856 = vand.u32 %v634, 4294901760
  %v857 = vsub.f32 %v634, %v856
  %858 = vmatpush.msra.mxu0 %v857
  %v859 = vand.u32 %v641, 4294901760
  %v860 = vsub.f32 %v641, %v859
  %861 = vmatmul.f32.gmra.mxu0 %v860
  %v862 = vpop.f32.mrf.mxu0
  %v863 = vadd.f32 %v839, %v862
  %864 = vdwg.mxu0
  %865 = vmatpush.msra.mxu0 0.0
  %866 = vmatpush.msra.mxu0 0.0
  %867 = vmatpush.msra.mxu0 0.0
  %868 = vmatpush.msra.mxu0 0.0
  %869 = vmatpush.msra.mxu0 0.0
  %870 = vmatpush.msra.mxu0 0.0
  %871 = vmatpush.msra.mxu0 0.0
  %872 = vmatpush.msra.mxu0 0.0
  %873 = vmatpush.msra.mxu0 0.0
  %874 = vmatpush.msra.mxu0 0.0
  %875 = vmatpush.msra.mxu0 0.0
  %876 = vmatpush.msra.mxu0 0.0
  %877 = vmatpush.msra.mxu0 0.0
  %878 = vmatpush.msra.mxu0 0.0
  %879 = vmatpush.msra.mxu0 0.0
  %v880 = vand.u32 %v634, 4294901760
  %881 = vmatpush.msra.mxu0 %v880
  %v882 = vand.u32 %v641, 4294901760
  %v883 = vsub.f32 %v641, %v882
  %v884 = vand.u32 %v883, 4294901760
  %885 = vmatmul.f32.gmra.mxu0 %v884
  %v886 = vpop.f32.mrf.mxu0
  %v887 = vadd.f32 %v863, %v886
  %888 = vdwg.mxu0
  %889 = vmatpush.msra.mxu0 0.0
  %890 = vmatpush.msra.mxu0 0.0
  %891 = vmatpush.msra.mxu0 0.0
  %892 = vmatpush.msra.mxu0 0.0
  %893 = vmatpush.msra.mxu0 0.0
  %894 = vmatpush.msra.mxu0 0.0
  %895 = vmatpush.msra.mxu0 0.0
  %896 = vmatpush.msra.mxu0 0.0
  %897 = vmatpush.msra.mxu0 0.0
  %898 = vmatpush.msra.mxu0 0.0
  %899 = vmatpush.msra.mxu0 0.0
  %900 = vmatpush.msra.mxu0 0.0
  %901 = vmatpush.msra.mxu0 0.0
  %902 = vmatpush.msra.mxu0 0.0
  %903 = vmatpush.msra.mxu0 0.0
  %v904 = vand.u32 %v634, 4294901760
  %v905 = vsub.f32 %v634, %v904
  %v906 = vand.u32 %v905, 4294901760
  %907 = vmatpush.msra.mxu0 %v906
  %v908 = vand.u32 %v641, 4294901760
  %909 = vmatmul.f32.gmra.mxu0 %v908
  %v910 = vpop.f32.mrf.mxu0
  %v911 = vadd.f32 %v887, %v910
  %912 = vdwg.mxu0
  %913 = vmatpush.msra.mxu0 0.0
  %914 = vmatpush.msra.mxu0 0.0
  %915 = vmatpush.msra.mxu0 0.0
  %916 = vmatpush.msra.mxu0 0.0
  %917 = vmatpush.msra.mxu0 0.0
  %918 = vmatpush.msra.mxu0 0.0
  %919 = vmatpush.msra.mxu0 0.0
  %920 = vmatpush.msra.mxu0 0.0
  %921 = vmatpush.msra.mxu0 0.0
  %922 = vmatpush.msra.mxu0 0.0
  %923 = vmatpush.msra.mxu0 0.0
  %924 = vmatpush.msra.mxu0 0.0
  %925 = vmatpush.msra.mxu0 0.0
  %926 = vmatpush.msra.mxu0 0.0
  %927 = vmatpush.msra.mxu0 0.0
  %v928 = vand.u32 %v634, 4294901760
  %929 = vmatpush.msra.mxu0 %v928
  %v930 = vand.u32 %v641, 4294901760
  %931 = vmatmul.f32.gmra.mxu0 %v930
  %v932 = vpop.f32.mrf.mxu0
  %v933 = vadd.f32 %v911, %v932
  %934 = vdwg.mxu0
  %v935 = vmul.f32 %v787, 0.5
  %v936 = vmul.f32 %v933, 0.5
  %v937 = vtanh.pop %v935
  %v938 = vtanh.pop %v936
  %v939 = vmul.f32 %v937, 0.5
  %v940 = vmul.f32 %v938, 0.5
  %v941 = vadd.f32 %v939, 1.5
  %v942 = vadd.f32 %v940, 1.5
  %v943 = vmul.f32 %v575, %v941
  %v944 = vmul.f32 %v576, %v942
  %v945 = vadd.f32 %v943, %v944
  %946 = vadd.xlane.f32.xlu0 %v945
  %v947 = vpop.xlane.xlu0 %946
  %v948 = vmul.f32 %v947, 0.00390625
  %v949 = vsub.f32 %v943, %v948
  %v950 = vsub.f32 %v944, %v948
  %v951 = vmul.f32 %v949, %v949
  %v952 = vmul.f32 %v950, %v950
  %v953 = vadd.f32 %v951, %v952
  %954 = vadd.xlane.f32.xlu0 %v953
  %v955 = vpop.xlane.xlu0 %954
  %v956 = vmul.f32 %v955, 0.003921569
  %v957 = vadd.f32 %v956, 0.0001
  %v958 = vmul.f32 %v957, 4.0
  %v959 = vrcp.pop %v958
  %v960 = vmul.f32 %v958, %v959
  %v961 = vsub.f32 1.0, %v960
  %v962 = vmul.f32 %v959, %v961
  %v963 = vadd.f32 %v959, %v962
  %vm964 = vweird.f32 %v958
  %vm965 = vweird.f32 %v959
  %vm966 = vmor %vm964, %vm965
  %v967 = vsel %vm966, %v959, %v963
  %v968 = vand.u32 2147483647, %v958
  %vm969 = vcmp.eq.f32.partialorder %v968, 8.507059e+37
  %v970 = vand.u32 %v958, 2147483648
  %v971 = vor.u32 1.1754944e-38, %v970
  %v972 = vsel %vm969, %v971, %v967
  %v973 = vmul.f32 %v951, %v972
  %v974 = vmul.f32 %v952, %v972
  %v975 = vadd.f32 %v973, 0.5
  %v976 = vadd.f32 %v974, 0.5
  %v977 = vmul.f32 %v975, 0.5
  %v978 = vmul.f32 %v976, 0.5
  %v979 = vtanh.pop %v977
  %v980 = vtanh.pop %v978
  %v981 = vmul.f32 %v979, 0.5
  %v982 = vmul.f32 %v980, 0.5
  %v983 = vadd.f32 %v981, 0.5
  %v984 = vadd.f32 %v982, 0.5
  %v985 = vmul.f32 %v943, %v983
  %v986 = vmul.f32 %v944, %v984
  %v987 = vsub.f32 %v533, %v985
  %v988 = vsub.f32 %v534, %v986
  %v989 = vand.u32 2147483647, %v987
  %v990 = vand.u32 2147483647, %v988
  %v991 = vadd.f32 %v989, %v990
  %992 = vadd.xlane.f32.xlu0 %v991
  %v993 = vpop.xlane.xlu0 %992
  %v994 = vmul.f32 %v993, 0.00390625
  %v995 = vsub.f32 %v989, %v994
  %v996 = vsub.f32 %v990, %v994
  %v997 = vmul.f32 %v995, %v995
  %v998 = vmul.f32 %v996, %v996
  %v999 = vadd.f32 %v997, %v998
  %1000 = vadd.xlane.f32.xlu0 %v999
  %v1001 = vpop.xlane.xlu0 %1000
  %v1002 = vmul.f32 %v1001, 0.003921569
  %v1003 = vadd.f32 %v1002, 0.0001
  %v1004 = vmul.f32 %v1003, 4.0
  %v1005 = vrcp.pop %v1004
  %v1006 = vmul.f32 %v1004, %v1005
  %v1007 = vsub.f32 1.0, %v1006
  %v1008 = vmul.f32 %v1005, %v1007
  %v1009 = vadd.f32 %v1005, %v1008
  %vm1010 = vweird.f32 %v1004
  %vm1011 = vweird.f32 %v1005
  %vm1012 = vmor %vm1010, %vm1011
  %v1013 = vsel %vm1012, %v1005, %v1009
  %v1014 = vand.u32 2147483647, %v1004
  %vm1015 = vcmp.eq.f32.partialorder %v1014, 8.507059e+37
  %v1016 = vand.u32 %v1004, 2147483648
  %v1017 = vor.u32 1.1754944e-38, %v1016
  %v1018 = vsel %vm1015, %v1017, %v1013
  %v1019 = vmul.f32 %v997, %v1018
  %v1020 = vmul.f32 %v998, %v1018
  %v1021 = vadd.f32 %v1019, 0.5
  %v1022 = vadd.f32 %v1020, 0.5
  %v1023 = vmul.f32 %v1021, 0.5
  %v1024 = vmul.f32 %v1022, 0.5
  %v1025 = vtanh.pop %v1023
  %v1026 = vtanh.pop %v1024
  %v1027 = vmul.f32 %v1025, 0.5
  %v1028 = vmul.f32 %v1026, 0.5
  %v1029 = vadd.f32 %v1027, 0.5
  %v1030 = vadd.f32 %v1028, 0.5
  %v1031 = vmul.f32 %v989, %v1029
  %v1032 = vmul.f32 %v990, %v1030
  %1033 = vst [vmem:[%s7] sm:$0xff] %v1031
  %1034 = vst [vmem:[%s7 + $0x8] sm:$0xff] %v1032
  // Predicated region
  $region30: #{cbm3d_forward.1} parent=0 // pred_check
    _
  $region31: #{cbm3d_forward.1} parent=0 // pred_check_branch
    %1036 = sbr.rel (0) target = $region33
  $region32: #{cbm3d_forward.1} parent=0 // pred_region
    _
  $region33: #{cbm3d_forward.1} parent=0 // pred_fallthru
    _
  // Predicated region
  $region34: #{cbm3d_forward.1} parent=0 // pred_check
    _
  $region35: #{cbm3d_forward.1} parent=0 // pred_check_branch
    %1038 = sbr.rel (0) target = $region37
  $region36: #{cbm3d_forward.1} parent=0 // pred_region
    _
  $region37: #{cbm3d_forward.1} parent=0 // pred_fallthru
    _

</llo_original>
